<compile_context>
chip_gen: v7x
topology: tpu7x:2x2x1
jax: 0.10.0
libtpu: 0.0.40
codegen_flags: <defaults>
</compile_context>

<pallas_src>
import functools

import jax
import jax.numpy as jnp
from jax import lax
from jax.experimental import pallas as pl
from jax.experimental.pallas import tpu as pltpu


# ---------------------------------------------------------------------------
# In-kernel math
# ---------------------------------------------------------------------------
def _gram_frob_loss(rows, *, normalize, batch):
    """rows: list (len K) of [3 x (1, B) f32] component rows, batch on lanes.

    Returns (1, 1) f32: mean_b || M_b M_b^T - I_3 ||_F^2.
    """
    k_cols = len(rows)
    if normalize:
        nrows = []
        for k in range(k_cols):
            r0, r1, r2 = rows[k]
            norm2 = r0 * r0 + r1 * r1 + r2 * r2           # (1, B)
            inv = lax.rsqrt(norm2)                        # EUP slot; matches p/||p|| (no eps)
            nrows.append([r0 * inv, r1 * inv, r2 * inv])
        rows = nrows

    def gram(i, j):
        acc = rows[0][i] * rows[0][j]                     # (1, B) lane-parallel FMA chain
        for k in range(1, k_cols):
            acc = acc + rows[k][i] * rows[k][j]
        return acc

    loss = jnp.zeros((1, batch), jnp.float32)
    for i in range(3):                                    # diagonal: (g_ii - 1)^2
        d = gram(i, i) - 1.0
        loss = loss + d * d
    for i in range(3):                                    # off-diagonal (symmetry): 2*g_ij^2
        for j in range(i + 1, 3):
            g = gram(i, j)
            loss = loss + 2.0 * (g * g)
    # batch mean -> (1, 1)
    return jnp.sum(loss, axis=1, keepdims=True) * (1.0 / float(batch))


def _reg_kernel(w_ref, x_ref, out_ref, *, kp, kq, batch):
    """w_ref: (1,1) f32 SMEM.  x_ref: ((kp+kq)*3, B) VMEM.  out_ref: (1,2) f32 VMEM."""
    x = x_ref[...].astype(jnp.float32)
    w = w_ref[0, 0]

    def rows_at(base, k):
        # Hoist every sublane row slice exactly once; reused by norm + all Gram chains.
        return [[x[base + c * 3 + i: base + c * 3 + i + 1, :] for i in range(3)]
                for c in range(k)]

    if kp > 0:
        p_loss = _gram_frob_loss(rows_at(0, kp), normalize=True, batch=batch) * w
    else:
        p_loss = jnp.zeros((1, 1), jnp.float32)
    if kq > 0:
        q_loss = _gram_frob_loss(rows_at(kp * 3, kq), normalize=False, batch=batch) * w
    else:
        q_loss = jnp.zeros((1, 1), jnp.float32)

    # Single (1, 2) store: lane 0 = plane loss, lane 1 = quat loss.
    lane = lax.broadcasted_iota(jnp.int32, (1, 2), 1)
    out_ref[...] = jnp.where(lane == 0, p_loss, q_loss)


# ---------------------------------------------------------------------------
# Wrapper
# ---------------------------------------------------------------------------
def _slab(tensors, lo, hi):
    """list of K (B, 4) -> (K*3, B): component axis flattened onto sublanes, batch on lanes."""
    stk = jnp.stack(tensors, axis=0)                      # (K, B, 4)   one fusion
    comp = jnp.transpose(stk[:, :, lo:hi], (0, 2, 1))     # (K, 3, B)
    k, _, b = comp.shape
    return comp.reshape(k * 3, b)


def regularization_loss(plane=None, quat=None, weight=1.0):
    """Pallas equivalent of RegularizationLoss.forward.

    plane / quat: lists of (B, 4) arrays (or None).
    Returns (reg_plane_loss, reg_rot_loss) as float32 scalars.
    """
    zero = jnp.zeros((), jnp.float32)
    if plane is None and quat is None:
        return zero, zero

    w = jnp.asarray(weight, jnp.float32).reshape(1, 1)

    slabs = []
    kp = kq = 0
    batch = None
    if plane is not None:
        kp = len(plane)
        batch = plane[0].shape[0]
        slabs.append(_slab(plane, 0, 3))
    if quat is not None:
        kq = len(quat)
        batch = quat[0].shape[0]
        slabs.append(_slab(quat, 1, 4))
    slab = slabs[0] if len(slabs) == 1 else jnp.concatenate(slabs, axis=0)  # ((kp+kq)*3, B)

    out = pl.pallas_call(
        functools.partial(_reg_kernel, kp=kp, kq=kq, batch=batch),
        out_shape=jax.ShapeDtypeStruct((1, 2), jnp.float32),
        in_specs=[pl.BlockSpec(memory_space=pltpu.MemorySpace.SMEM),   # weight scalar
                  pl.BlockSpec(memory_space=pltpu.MemorySpace.VMEM)],  # combined slab
        out_specs=pl.BlockSpec(memory_space=pltpu.MemorySpace.VMEM),
    )(w, slab)

    reg_plane = out[0, 0] if plane is not None else zero
    reg_rot = out[0, 1] if quat is not None else zero
    return reg_plane, reg_rot


# ---------------------------------------------------------------------------
# Pure-JAX reference (mirrors the PyTorch code) for a correctness check.
# ---------------------------------------------------------------------------
def _reference(plane, quat, weight=1.0):
    eye = jnp.eye(3, dtype=jnp.float32)

    def frob_loss(mat):                     # mat: (B, 3, K), columns = vectors
        g = jnp.einsum('bik,bjk->bij', mat, mat)
        return jnp.mean(jnp.sum((g - eye) ** 2, axis=(1, 2))) * weight

    n = [p[:, 0:3] / jnp.linalg.norm(p[:, 0:3], axis=1, keepdims=True) for p in plane]
    plane_mat = jnp.stack(n, axis=2)        # (B, 3, K)
    q = [qq[:, 1:4] for qq in quat]
    quat_mat = jnp.stack(q, axis=2)         # (B, 3, K)
    return frob_loss(plane_mat), frob_loss(quat_mat)


if __name__ == "__main__":
    key = jax.random.PRNGKey(0)
    B, K = 8, 3                              # batch, number of planes/quats
    WEIGHT = 0.5
    keys = jax.random.split(key, 2 * K)
    plane = [jax.random.normal(keys[i], (B, 4), dtype=jnp.float32) for i in range(K)]
    quat = [jax.random.normal(keys[K + i], (B, 4), dtype=jnp.float32) for i in range(K)]

    # Fused path (both losses, one pallas_call, one input slab, one (1,2) output).
    plane_loss, rot_loss = regularization_loss(plane, quat, weight=WEIGHT)
    plane_loss, rot_loss = jax.block_until_ready((plane_loss, rot_loss))

    ref_plane, ref_rot = _reference(plane, quat, weight=WEIGHT)
    assert jnp.allclose(plane_loss, ref_plane, rtol=1e-4, atol=1e-5), (plane_loss, ref_plane)
    assert jnp.allclose(rot_loss, ref_rot, rtol=1e-4, atol=1e-5), (rot_loss, ref_rot)

    # Single-input branches must agree with the reference too.
    p_only, p_zero = regularization_loss(plane=plane, quat=None, weight=WEIGHT)
    q_zero, q_only = regularization_loss(plane=None, quat=quat, weight=WEIGHT)
    p_only, p_zero, q_only, q_zero = jax.block_until_ready((p_only, p_zero, q_only, q_zero))
    assert jnp.allclose(p_only, ref_plane, rtol=1e-4, atol=1e-5), (p_only, ref_plane)
    assert jnp.allclose(q_only, ref_rot, rtol=1e-4, atol=1e-5), (q_only, ref_rot)
    assert float(p_zero) == 0.0 and float(q_zero) == 0.0

    print("KERNEL_OK")
</pallas_src>

<mosaic_0001>
module attributes {stable_mosaic.version = 11 : i64} {
  func.func @_reg_kernel(%arg0: memref<1x1xf32, #tpu.memory_space<smem>>, %arg1: memref<18x8xf32, #tpu.memory_space<vmem>>, %arg2: memref<1x2xf32, #tpu.memory_space<vmem>>) attributes {dimension_semantics = [], scalar_prefetch = 0 : i64, scratch_operands = 0 : i64, tpu.core_type = #tpu.core_type<tc>} {
    %c0 = arith.constant 0 : index
    %c0_0 = arith.constant 0 : index
    %0 = vector.load %arg1[%c0, %c0_0] : memref<18x8xf32, #tpu.memory_space<vmem>>, vector<18x8xf32>
    %c0_1 = arith.constant 0 : index
    %c0_2 = arith.constant 0 : index
    %1 = memref.load %arg0[%c0_1, %c0_2] : memref<1x1xf32, #tpu.memory_space<smem>>
    %2 = vector.extract_strided_slice %0 {offsets = [0, 0], sizes = [1, 8], strides = [1, 1]} : vector<18x8xf32> to vector<1x8xf32>
    %3 = vector.extract_strided_slice %0 {offsets = [1, 0], sizes = [1, 8], strides = [1, 1]} : vector<18x8xf32> to vector<1x8xf32>
    %4 = vector.extract_strided_slice %0 {offsets = [2, 0], sizes = [1, 8], strides = [1, 1]} : vector<18x8xf32> to vector<1x8xf32>
    %5 = vector.extract_strided_slice %0 {offsets = [3, 0], sizes = [1, 8], strides = [1, 1]} : vector<18x8xf32> to vector<1x8xf32>
    %6 = vector.extract_strided_slice %0 {offsets = [4, 0], sizes = [1, 8], strides = [1, 1]} : vector<18x8xf32> to vector<1x8xf32>
    %7 = vector.extract_strided_slice %0 {offsets = [5, 0], sizes = [1, 8], strides = [1, 1]} : vector<18x8xf32> to vector<1x8xf32>
    %8 = vector.extract_strided_slice %0 {offsets = [6, 0], sizes = [1, 8], strides = [1, 1]} : vector<18x8xf32> to vector<1x8xf32>
    %9 = vector.extract_strided_slice %0 {offsets = [7, 0], sizes = [1, 8], strides = [1, 1]} : vector<18x8xf32> to vector<1x8xf32>
    %10 = vector.extract_strided_slice %0 {offsets = [8, 0], sizes = [1, 8], strides = [1, 1]} : vector<18x8xf32> to vector<1x8xf32>
    %11 = arith.mulf %2, %2 : vector<1x8xf32>
    %12 = arith.mulf %3, %3 : vector<1x8xf32>
    %13 = arith.addf %11, %12 : vector<1x8xf32>
    %14 = arith.mulf %4, %4 : vector<1x8xf32>
    %15 = arith.addf %13, %14 : vector<1x8xf32>
    %16 = math.rsqrt %15 : vector<1x8xf32>
    %17 = arith.mulf %2, %16 : vector<1x8xf32>
    %18 = arith.mulf %3, %16 : vector<1x8xf32>
    %19 = arith.mulf %4, %16 : vector<1x8xf32>
    %20 = arith.mulf %5, %5 : vector<1x8xf32>
    %21 = arith.mulf %6, %6 : vector<1x8xf32>
    %22 = arith.addf %20, %21 : vector<1x8xf32>
    %23 = arith.mulf %7, %7 : vector<1x8xf32>
    %24 = arith.addf %22, %23 : vector<1x8xf32>
    %25 = math.rsqrt %24 : vector<1x8xf32>
    %26 = arith.mulf %5, %25 : vector<1x8xf32>
    %27 = arith.mulf %6, %25 : vector<1x8xf32>
    %28 = arith.mulf %7, %25 : vector<1x8xf32>
    %29 = arith.mulf %8, %8 : vector<1x8xf32>
    %30 = arith.mulf %9, %9 : vector<1x8xf32>
    %31 = arith.addf %29, %30 : vector<1x8xf32>
    %32 = arith.mulf %10, %10 : vector<1x8xf32>
    %33 = arith.addf %31, %32 : vector<1x8xf32>
    %34 = math.rsqrt %33 : vector<1x8xf32>
    %35 = arith.mulf %8, %34 : vector<1x8xf32>
    %36 = arith.mulf %9, %34 : vector<1x8xf32>
    %37 = arith.mulf %10, %34 : vector<1x8xf32>
    %cst = arith.constant 0.000000e+00 : f32
    %38 = vector.broadcast %cst : f32 to vector<1x8xf32>
    %39 = arith.mulf %17, %17 : vector<1x8xf32>
    %40 = arith.mulf %26, %26 : vector<1x8xf32>
    %41 = arith.addf %39, %40 : vector<1x8xf32>
    %42 = arith.mulf %35, %35 : vector<1x8xf32>
    %43 = arith.addf %41, %42 : vector<1x8xf32>
    %cst_3 = arith.constant 1.000000e+00 : f32
    %44 = vector.broadcast %cst_3 : f32 to vector<1x8xf32>
    %45 = arith.subf %43, %44 : vector<1x8xf32>
    %46 = arith.mulf %45, %45 : vector<1x8xf32>
    %47 = arith.addf %38, %46 : vector<1x8xf32>
    %48 = arith.mulf %18, %18 : vector<1x8xf32>
    %49 = arith.mulf %27, %27 : vector<1x8xf32>
    %50 = arith.addf %48, %49 : vector<1x8xf32>
    %51 = arith.mulf %36, %36 : vector<1x8xf32>
    %52 = arith.addf %50, %51 : vector<1x8xf32>
    %cst_4 = arith.constant 1.000000e+00 : f32
    %53 = vector.broadcast %cst_4 : f32 to vector<1x8xf32>
    %54 = arith.subf %52, %53 : vector<1x8xf32>
    %55 = arith.mulf %54, %54 : vector<1x8xf32>
    %56 = arith.addf %47, %55 : vector<1x8xf32>
    %57 = arith.mulf %19, %19 : vector<1x8xf32>
    %58 = arith.mulf %28, %28 : vector<1x8xf32>
    %59 = arith.addf %57, %58 : vector<1x8xf32>
    %60 = arith.mulf %37, %37 : vector<1x8xf32>
    %61 = arith.addf %59, %60 : vector<1x8xf32>
    %cst_5 = arith.constant 1.000000e+00 : f32
    %62 = vector.broadcast %cst_5 : f32 to vector<1x8xf32>
    %63 = arith.subf %61, %62 : vector<1x8xf32>
    %64 = arith.mulf %63, %63 : vector<1x8xf32>
    %65 = arith.addf %56, %64 : vector<1x8xf32>
    %66 = arith.mulf %17, %18 : vector<1x8xf32>
    %67 = arith.mulf %26, %27 : vector<1x8xf32>
    %68 = arith.addf %66, %67 : vector<1x8xf32>
    %69 = arith.mulf %35, %36 : vector<1x8xf32>
    %70 = arith.addf %68, %69 : vector<1x8xf32>
    %71 = arith.mulf %70, %70 : vector<1x8xf32>
    %cst_6 = arith.constant 2.000000e+00 : f32
    %72 = vector.broadcast %cst_6 : f32 to vector<1x8xf32>
    %73 = arith.mulf %72, %71 : vector<1x8xf32>
    %74 = arith.addf %65, %73 : vector<1x8xf32>
    %75 = arith.mulf %17, %19 : vector<1x8xf32>
    %76 = arith.mulf %26, %28 : vector<1x8xf32>
    %77 = arith.addf %75, %76 : vector<1x8xf32>
    %78 = arith.mulf %35, %37 : vector<1x8xf32>
    %79 = arith.addf %77, %78 : vector<1x8xf32>
    %80 = arith.mulf %79, %79 : vector<1x8xf32>
    %cst_7 = arith.constant 2.000000e+00 : f32
    %81 = vector.broadcast %cst_7 : f32 to vector<1x8xf32>
    %82 = arith.mulf %81, %80 : vector<1x8xf32>
    %83 = arith.addf %74, %82 : vector<1x8xf32>
    %84 = arith.mulf %18, %19 : vector<1x8xf32>
    %85 = arith.mulf %27, %28 : vector<1x8xf32>
    %86 = arith.addf %84, %85 : vector<1x8xf32>
    %87 = arith.mulf %36, %37 : vector<1x8xf32>
    %88 = arith.addf %86, %87 : vector<1x8xf32>
    %89 = arith.mulf %88, %88 : vector<1x8xf32>
    %cst_8 = arith.constant 2.000000e+00 : f32
    %90 = vector.broadcast %cst_8 : f32 to vector<1x8xf32>
    %91 = arith.mulf %90, %89 : vector<1x8xf32>
    %92 = arith.addf %83, %91 : vector<1x8xf32>
    %cst_9 = arith.constant dense<0.000000e+00> : vector<1xf32>
    %93 = vector.multi_reduction <add>, %92, %cst_9 [1] : vector<1x8xf32> to vector<1xf32>
    %94 = vector.shape_cast %93 : vector<1xf32> to vector<1x1xf32>
    %cst_10 = arith.constant 1.250000e-01 : f32
    %95 = vector.broadcast %cst_10 : f32 to vector<1x1xf32>
    %96 = arith.mulf %94, %95 : vector<1x1xf32>
    %97 = vector.broadcast %1 : f32 to vector<1x1xf32>
    %98 = arith.mulf %96, %97 : vector<1x1xf32>
    %99 = vector.extract_strided_slice %0 {offsets = [9, 0], sizes = [1, 8], strides = [1, 1]} : vector<18x8xf32> to vector<1x8xf32>
    %100 = vector.extract_strided_slice %0 {offsets = [10, 0], sizes = [1, 8], strides = [1, 1]} : vector<18x8xf32> to vector<1x8xf32>
    %101 = vector.extract_strided_slice %0 {offsets = [11, 0], sizes = [1, 8], strides = [1, 1]} : vector<18x8xf32> to vector<1x8xf32>
    %102 = vector.extract_strided_slice %0 {offsets = [12, 0], sizes = [1, 8], strides = [1, 1]} : vector<18x8xf32> to vector<1x8xf32>
    %103 = vector.extract_strided_slice %0 {offsets = [13, 0], sizes = [1, 8], strides = [1, 1]} : vector<18x8xf32> to vector<1x8xf32>
    %104 = vector.extract_strided_slice %0 {offsets = [14, 0], sizes = [1, 8], strides = [1, 1]} : vector<18x8xf32> to vector<1x8xf32>
    %105 = vector.extract_strided_slice %0 {offsets = [15, 0], sizes = [1, 8], strides = [1, 1]} : vector<18x8xf32> to vector<1x8xf32>
    %106 = vector.extract_strided_slice %0 {offsets = [16, 0], sizes = [1, 8], strides = [1, 1]} : vector<18x8xf32> to vector<1x8xf32>
    %107 = vector.extract_strided_slice %0 {offsets = [17, 0], sizes = [1, 8], strides = [1, 1]} : vector<18x8xf32> to vector<1x8xf32>
    %cst_11 = arith.constant 0.000000e+00 : f32
    %108 = vector.broadcast %cst_11 : f32 to vector<1x8xf32>
    %109 = arith.mulf %99, %99 : vector<1x8xf32>
    %110 = arith.mulf %102, %102 : vector<1x8xf32>
    %111 = arith.addf %109, %110 : vector<1x8xf32>
    %112 = arith.mulf %105, %105 : vector<1x8xf32>
    %113 = arith.addf %111, %112 : vector<1x8xf32>
    %cst_12 = arith.constant 1.000000e+00 : f32
    %114 = vector.broadcast %cst_12 : f32 to vector<1x8xf32>
    %115 = arith.subf %113, %114 : vector<1x8xf32>
    %116 = arith.mulf %115, %115 : vector<1x8xf32>
    %117 = arith.addf %108, %116 : vector<1x8xf32>
    %118 = arith.mulf %100, %100 : vector<1x8xf32>
    %119 = arith.mulf %103, %103 : vector<1x8xf32>
    %120 = arith.addf %118, %119 : vector<1x8xf32>
    %121 = arith.mulf %106, %106 : vector<1x8xf32>
    %122 = arith.addf %120, %121 : vector<1x8xf32>
    %cst_13 = arith.constant 1.000000e+00 : f32
    %123 = vector.broadcast %cst_13 : f32 to vector<1x8xf32>
    %124 = arith.subf %122, %123 : vector<1x8xf32>
    %125 = arith.mulf %124, %124 : vector<1x8xf32>
    %126 = arith.addf %117, %125 : vector<1x8xf32>
    %127 = arith.mulf %101, %101 : vector<1x8xf32>
    %128 = arith.mulf %104, %104 : vector<1x8xf32>
    %129 = arith.addf %127, %128 : vector<1x8xf32>
    %130 = arith.mulf %107, %107 : vector<1x8xf32>
    %131 = arith.addf %129, %130 : vector<1x8xf32>
    %cst_14 = arith.constant 1.000000e+00 : f32
    %132 = vector.broadcast %cst_14 : f32 to vector<1x8xf32>
    %133 = arith.subf %131, %132 : vector<1x8xf32>
    %134 = arith.mulf %133, %133 : vector<1x8xf32>
    %135 = arith.addf %126, %134 : vector<1x8xf32>
    %136 = arith.mulf %99, %100 : vector<1x8xf32>
    %137 = arith.mulf %102, %103 : vector<1x8xf32>
    %138 = arith.addf %136, %137 : vector<1x8xf32>
    %139 = arith.mulf %105, %106 : vector<1x8xf32>
    %140 = arith.addf %138, %139 : vector<1x8xf32>
    %141 = arith.mulf %140, %140 : vector<1x8xf32>
    %cst_15 = arith.constant 2.000000e+00 : f32
    %142 = vector.broadcast %cst_15 : f32 to vector<1x8xf32>
    %143 = arith.mulf %142, %141 : vector<1x8xf32>
    %144 = arith.addf %135, %143 : vector<1x8xf32>
    %145 = arith.mulf %99, %101 : vector<1x8xf32>
    %146 = arith.mulf %102, %104 : vector<1x8xf32>
    %147 = arith.addf %145, %146 : vector<1x8xf32>
    %148 = arith.mulf %105, %107 : vector<1x8xf32>
    %149 = arith.addf %147, %148 : vector<1x8xf32>
    %150 = arith.mulf %149, %149 : vector<1x8xf32>
    %cst_16 = arith.constant 2.000000e+00 : f32
    %151 = vector.broadcast %cst_16 : f32 to vector<1x8xf32>
    %152 = arith.mulf %151, %150 : vector<1x8xf32>
    %153 = arith.addf %144, %152 : vector<1x8xf32>
    %154 = arith.mulf %100, %101 : vector<1x8xf32>
    %155 = arith.mulf %103, %104 : vector<1x8xf32>
    %156 = arith.addf %154, %155 : vector<1x8xf32>
    %157 = arith.mulf %106, %107 : vector<1x8xf32>
    %158 = arith.addf %156, %157 : vector<1x8xf32>
    %159 = arith.mulf %158, %158 : vector<1x8xf32>
    %cst_17 = arith.constant 2.000000e+00 : f32
    %160 = vector.broadcast %cst_17 : f32 to vector<1x8xf32>
    %161 = arith.mulf %160, %159 : vector<1x8xf32>
    %162 = arith.addf %153, %161 : vector<1x8xf32>
    %cst_18 = arith.constant dense<0.000000e+00> : vector<1xf32>
    %163 = vector.multi_reduction <add>, %162, %cst_18 [1] : vector<1x8xf32> to vector<1xf32>
    %164 = vector.shape_cast %163 : vector<1xf32> to vector<1x1xf32>
    %cst_19 = arith.constant 1.250000e-01 : f32
    %165 = vector.broadcast %cst_19 : f32 to vector<1x1xf32>
    %166 = arith.mulf %164, %165 : vector<1x1xf32>
    %167 = vector.broadcast %1 : f32 to vector<1x1xf32>
    %168 = arith.mulf %166, %167 : vector<1x1xf32>
    %169 = tpu.iota {dimensions = array<i32: 1>} : vector<1x2xi32>
    %c0_i32 = arith.constant 0 : i32
    %170 = vector.broadcast %c0_i32 : i32 to vector<1x2xi32>
    %171 = arith.cmpi eq, %169, %170 : vector<1x2xi32>
    %172 = vector.shape_cast %98 : vector<1x1xf32> to vector<1x1xf32>
    %173 = vector.broadcast %172 : vector<1x1xf32> to vector<1x2xf32>
    %174 = vector.shape_cast %168 : vector<1x1xf32> to vector<1x1xf32>
    %175 = vector.broadcast %174 : vector<1x1xf32> to vector<1x2xf32>
    %176 = arith.select %171, %173, %175 : vector<1x2xi1>, vector<1x2xf32>
    %c0_20 = arith.constant 0 : index
    %c0_21 = arith.constant 0 : index
    %177 = vector.load %arg2[%c0_20, %c0_21] : memref<1x2xf32, #tpu.memory_space<vmem>>, vector<1x2xf32>
    tpu.vector_store %arg2[%c0_20, %c0_21], %176 {strides = array<i32>} : memref<1x2xf32, #tpu.memory_space<vmem>>, vector<1x2xf32>,
    return
  }
}

</mosaic_0001>

<llo_original>
// kernel: tpu_custom_call.1
$region0: #{tpu_custom_call.1}
  #allocation0 [shape = 'u32[]', space=smem, size = 0x4, offset = 0x4, fixed_abs, tag = 'smem constant byte address 0x4 - core index']
  #allocation1 [shape = 'u32[144,128]{1,0:T(1,128)}', space=vmem, size = 0x12000, scoped, tag = 'internal scratch']
  #allocation2 [shape = 'f32[1,1]{1,0:T(1,128)S(6)}', space=smem, size = 0x200, scoped, tag = 'scoped memory for tpu_custom_call.1']
  %s0 = inlined_call_operand.<no memory space> [shape: f32[1,1], index: 0, kind: input, shape index: {}]
  %s1 = inlined_call_operand.vmem [shape: f32[18,8], index: 1, kind: input, shape index: {}]
  %s2 = inlined_call_operand.hbm [shape: f32[1,2], index: 2, kind: output, shape index: {}]
  %s3 = sld [smem:[#allocation0]]
  $region18: #{tpu_custom_call.1} parent=0
    _
  %s5 = ssub.s32 1, %s3
  %s6 = scalar_select 0, %s5, %s3
  %7 = sst [smem:[#allocation2]] %s0
  $region1: #{tpu_custom_call.1} parent=0
    #allocation3 [shape = 'u8[512]{0}', space=vmem, size = 0x400, scoped, tag = 'output window, operand 0, single buffered']
    #allocation4 [shape = 's32[1]{0}', space=sflag, size = 0x4, scoped, tag = 'scoped memory for tpu_custom_call.1']
    %8 = vsyncpa [#allocation4], 0
    // Predicated region
    $region2: #{tpu_custom_call.1} parent=1 // pred_check
      _
    $region3: #{tpu_custom_call.1} parent=1 // pred_check_branch
      %10 = sbr.rel (0) target = $region5
    $region4: #{tpu_custom_call.1} parent=1 // pred_region
      _
    $region5: #{tpu_custom_call.1} parent=1 // pred_fallthru
      _
    // Predicated region
    $region6: #{tpu_custom_call.1} parent=1 // pred_check
      _
    $region7: #{tpu_custom_call.1} parent=1 // pred_check_branch
      %12 = sbr.rel (0) target = $region9
    $region8: #{tpu_custom_call.1} parent=1 // pred_region
      _
    $region9: #{tpu_custom_call.1} parent=1 // pred_fallthru
      _
    %v13 = vld [vmem:[%s1] sm:$0xff]
    %v14 = vld [vmem:[%s1 + $0x8] sm:$0xff]
    %v15 = vld [vmem:[%s1 + $0x10] sm:$0x3]
    %s16 = sld [smem:[#allocation2]]
    %v17 = vmul.f32 %v13, %v13
    %v19 = vrot.slane %v17, 1
    %v21 = vadd.f32 %v17, %v19
    %v22 = vrot.slane %v17, 2
    %v24 = vadd.f32 %v21, %v22
    %v25 = vrsqrt.pop %v24
    %v26 = vmul.f32 %v13, %v25
    %v28 = vrot.slane %v25, 7
    %v30 = vmul.f32 %v13, %v28
    %v31 = vrot.slane %v25, 6
    %v33 = vmul.f32 %v13, %v31
    %v34 = vmul.f32 %v14, %v14
    %v36 = vrot.slane %v34, 2
    %v38 = vadd.f32 %v21, %v36
    %v39 = vrsqrt.pop %v38
    %v40 = vmul.f32 %v13, %v39
    %v42 = vrot.slane %v39, 7
    %v44 = vmul.f32 %v13, %v42
    %v45 = vrot.slane %v39, 6
    %v47 = vmul.f32 %v14, %v45
    %v48 = vmul.f32 %v26, %v26
    %v50 = vrot.slane %v48, 3
    %v52 = vadd.f32 %v48, %v50
    %v53 = vmul.f32 %v40, %v40
    %v55 = vrot.slane %v53, 6
    %v57 = vadd.f32 %v52, %v55
    %v58 = vsub.f32 %v57, 1.0
    %v59 = vmul.f32 %v58, %v58
    %v60 = vadd.f32 %v59, 0.0
    %v61 = vmul.f32 %v30, %v30
    %v63 = vrot.slane %v61, 3
    %v65 = vadd.f32 %v61, %v63
    %v66 = vmul.f32 %v44, %v44
    %v68 = vrot.slane %v66, 6
    %v70 = vadd.f32 %v65, %v68
    %v71 = vsub.f32 %v70, 1.0
    %v72 = vmul.f32 %v71, %v71
    %v74 = vrot.slane %v72, 1
    %v76 = vadd.f32 %v60, %v74
    %v77 = vmul.f32 %v33, %v33
    %v79 = vrot.slane %v77, 3
    %v81 = vadd.f32 %v77, %v79
    %v82 = vmul.f32 %v47, %v47
    %v84 = vrot.slane %v82, 6
    %v86 = vadd.f32 %v81, %v84
    %v87 = vsub.f32 %v86, 1.0
    %v88 = vmul.f32 %v87, %v87
    %v90 = vrot.slane %v88, 2
    %v92 = vadd.f32 %v76, %v90
    %v94 = vrot.slane %v30, 1
    %v96 = vmul.f32 %v26, %v94
    %v98 = vrot.slane %v96, 3
    %v100 = vadd.f32 %v96, %v98
    %v102 = vrot.slane %v44, 1
    %v104 = vmul.f32 %v40, %v102
    %v106 = vrot.slane %v104, 6
    %v108 = vadd.f32 %v100, %v106
    %v109 = vmul.f32 %v108, %v108
    %v110 = vmul.f32 %v109, 2.0
    %v111 = vadd.f32 %v92, %v110
    %v113 = vrot.slane %v33, 2
    %v115 = vmul.f32 %v26, %v113
    %v117 = vrot.slane %v115, 3
    %v119 = vadd.f32 %v115, %v117
    %v121 = vrot.slane %v47, 2
    %v123 = vmul.f32 %v40, %v121
    %v125 = vrot.slane %v123, 6
    %v127 = vadd.f32 %v119, %v125
    %v128 = vmul.f32 %v127, %v127
    %v129 = vmul.f32 %v128, 2.0
    %v130 = vadd.f32 %v111, %v129
    %v131 = vrot.slane %v33, 1
    %v133 = vmul.f32 %v30, %v131
    %v135 = vrot.slane %v133, 3
    %v137 = vadd.f32 %v133, %v135
    %v138 = vrot.slane %v47, 1
    %v140 = vmul.f32 %v44, %v138
    %v142 = vrot.slane %v140, 6
    %v144 = vadd.f32 %v137, %v142
    %v145 = vmul.f32 %v144, %v144
    %v146 = vmul.f32 %v145, 2.0
    %v148 = vrot.slane %v146, 1
    %v150 = vadd.f32 %v130, %v148
    %vm151 = vcmask 57344
    %v152 = vsel %vm151, %v150, 0.0
    %153 = vadd.xlane.f32.xlu0 %v152
    %v154 = vpop.xlane.xlu0 %153
    %v155 = vmul.f32 %v154, 0.125
    %v156 = vstv %s16
    %v157 = vmul.f32 %v155, %v156
    %v158 = vrot.slane %v34, 3
    %v160 = vadd.f32 %v34, %v158
    %v161 = vrot.slane %v34, 6
    %v163 = vadd.f32 %v160, %v161
    %v164 = vsub.f32 %v163, 1.0
    %v165 = vmul.f32 %v164, %v164
    %v166 = vadd.f32 %v165, 0.0
    %v167 = vmul.f32 %v15, %v15
    %v169 = vrot.slane %v167, 6
    %v171 = vadd.f32 %v160, %v169
    %v172 = vsub.f32 %v171, 1.0
    %v173 = vmul.f32 %v172, %v172
    %v175 = vrot.slane %v173, 1
    %v177 = vadd.f32 %v166, %v175
    %v178 = vrot.slane %v173, 2
    %v180 = vadd.f32 %v177, %v178
    %v182 = vrot.slane %v14, 1
    %v184 = vmul.f32 %v14, %v182
    %v186 = vrot.slane %v184, 3
    %v188 = vadd.f32 %v184, %v186
    %v190 = vrot.slane %v15, 1
    %v192 = vmul.f32 %v14, %v190
    %v194 = vrot.slane %v192, 6
    %v196 = vadd.f32 %v188, %v194
    %v197 = vmul.f32 %v196, %v196
    %v198 = vmul.f32 %v197, 2.0
    %v199 = vadd.f32 %v180, %v198
    %v200 = vrot.slane %v14, 2
    %v202 = vmul.f32 %v14, %v200
    %v204 = vrot.slane %v202, 3
    %v206 = vadd.f32 %v202, %v204
    %v207 = vrot.slane %v15, 2
    %v209 = vmul.f32 %v14, %v207
    %v211 = vrot.slane %v209, 6
    %v213 = vadd.f32 %v206, %v211
    %v214 = vmul.f32 %v213, %v213
    %v215 = vmul.f32 %v214, 2.0
    %v216 = vadd.f32 %v199, %v215
    %v217 = vmul.f32 %v15, %v190
    %v219 = vrot.slane %v217, 6
    %v221 = vadd.f32 %v188, %v219
    %v222 = vmul.f32 %v221, %v221
    %v223 = vmul.f32 %v222, 2.0
    %v225 = vrot.slane %v223, 1
    %v227 = vadd.f32 %v216, %v225
    %vm228 = vcmask 58369
    %v229 = vsel %vm228, %v227, 0.0
    %230 = vadd.xlane.f32.xlu0 %v229
    %v231 = vpop.xlane.xlu0 %230
    %v232 = vmul.f32 %v231, 0.125
    %v233 = vmul.f32 %v232, %v156
    %v234 = vlaneseq
    %v235 = vand.u32 %v234, 127
    %vm236 = vcmp.eq.s32.totalorder %v235, 0
    %v238 = vrot.slane %v233, 1
    %v240 = vsel %vm236, %v157, %v238
    %vm241 = vcmask 8192
    %242 = vst.msk [vmem:[#allocation3] sm:$0x1] %vm241, %v240
    // Predicated region
    $region10: #{tpu_custom_call.1} parent=1 // pred_check
      _
    $region11: #{tpu_custom_call.1} parent=1 // pred_check_branch
      %244 = sbr.rel (0) target = $region13
    $region12: #{tpu_custom_call.1} parent=1 // pred_region
      %s246 = ssub.s32 16, 16
      %247 = vsyncadd [#allocation4], %s246
      %s249 = sshll.u32 [#allocation3], 4
      %s250 = int_to_ptr.vmem [resolvable:$true] %s249
      %252 = dma.vmem_to_hbm [thread:$0]  %s250, 16, %s2, [#allocation4]
    $region13: #{tpu_custom_call.1} parent=1 // pred_fallthru
      _
    // Predicated region
    $region14: #{tpu_custom_call.1} parent=1 // pred_check
      _
    $region15: #{tpu_custom_call.1} parent=1 // pred_check_branch
      %254 = sbr.rel (0) target = $region17
    $region16: #{tpu_custom_call.1} parent=1 // pred_region
      %255 = dma.done [#allocation4], 16
    $region17: #{tpu_custom_call.1} parent=1 // pred_fallthru
      _
    %256 = vsyncpa [#allocation4], 1

</llo_original>
